<compile_context>
chip_gen: v6e
topology: v6e:2x2x1
jax: 0.10.0
libtpu: 0.0.40
codegen_flags: <defaults>
</compile_context>

<pallas_src>
import functools

import jax
import jax.numpy as jnp
from jax.experimental import pallas as pl
from jax.experimental.pallas import tpu as pltpu


def _dwconv_kernel(x_ref, w_ref, b_ref, o_ref, *, C):
    # x_ref: (1, H, W*C)   one image; rows on sublanes, fused W*C on lanes
    # w_ref: (3, 3, W*C)   depthwise tap weights, pre-tiled over W onto lanes
    # b_ref: (1, W*C)      bias, pre-tiled over W onto lanes
    # o_ref: (1, H, W*C)
    H = x_ref.shape[1]
    WC = x_ref.shape[2]

    x = x_ref[0].astype(jnp.float32)      # (H, WC)
    w = w_ref[...].astype(jnp.float32)    # (3, 3, WC)
    b = b_ref[0].astype(jnp.float32)      # (WC,)

    # Row-shifted variants for the 3 ky taps (static sublane slice + zero halo row).
    zero_row = jnp.zeros((1, WC), jnp.float32)
    x_rows = (
        jnp.concatenate([zero_row, x[:H - 1, :]], axis=0),  # reads input row h-1
        x,                                                  # reads input row h
        jnp.concatenate([x[1:, :], zero_row], axis=0),      # reads input row h+1
    )

    # Lane-boundary masks for the kx = -1 / +1 column offsets (hoisted, used once each).
    lane_ids = jax.lax.broadcasted_iota(jnp.int32, (H, WC), 1)
    valid_left = lane_ids >= C            # dx = -1: needs lane l - C >= 0
    valid_right = lane_ids < (WC - C)     # dx = +1: needs lane l + C <  WC

    # Start the accumulator from the (hoisted, broadcast) bias.
    acc = jnp.broadcast_to(b, (H, WC))

    for kx in range(3):
        dx = kx - 1
        # Weighted 3-row partial sum for this column offset (pure VPU work).
        s = (x_rows[0] * w[0, kx, :]
             + x_rows[1] * w[1, kx, :]
             + x_rows[2] * w[2, kx, :])
        if dx == 0:
            acc = acc + s
        else:
            # Weights are tiled over W with period C, so the per-lane weight is invariant
            # under a lane rotation by C: rotate the already-weighted sum (one XLU roll
            # per nonzero dx) and zero the wrapped image border.
            s = pltpu.roll(s, (-dx * C) % WC, 1)
            acc = acc + jnp.where(valid_left if dx < 0 else valid_right, s, 0.0)

    o_ref[0] = acc.astype(o_ref.dtype)


def dwconv_pallas(x_bnc, weight_oihw, bias, H, W):
    """x_bnc: (B, N, C); weight_oihw: (C, 1, 3, 3) torch depthwise layout; bias: (C,)."""
    B, N, C = x_bnc.shape
    assert N == H * W
    WC = W * C

    # (B, N, C) -> lane-dense (B, H, W*C). Row-major memory, so this is a pure reshape
    # (equivalent to torch's transpose+view into NCHW followed by our NHWC fusion).
    x_hwc = x_bnc.reshape(B, H, WC)

    # (C, 1, 3, 3) -> (3, 3, C), then tile over W so lane l = w*C + c holds weight[c].
    w_33c = jnp.transpose(weight_oihw[:, 0, :, :], (1, 2, 0))   # (3, 3, C)
    w_lanes = jnp.tile(w_33c, (1, 1, W))                        # (3, 3, W*C)
    b_lanes = jnp.tile(bias, W).reshape(1, WC)                  # (1, W*C)

    out_hwc = pl.pallas_call(
        functools.partial(_dwconv_kernel, C=C),
        out_shape=jax.ShapeDtypeStruct((B, H, WC), x_bnc.dtype),
        grid_spec=pltpu.PrefetchScalarGridSpec(
            num_scalar_prefetch=0,
            grid=(B,),
            in_specs=[
                pl.BlockSpec((1, H, WC), lambda b: (b, 0, 0)),
                pl.BlockSpec((3, 3, WC), lambda b: (0, 0, 0)),
                pl.BlockSpec((1, WC), lambda b: (0, 0)),
            ],
            out_specs=pl.BlockSpec((1, H, WC), lambda b: (b, 0, 0)),
        ),
        compiler_params=pltpu.CompilerParams(dimension_semantics=("parallel",)),
    )(x_hwc, w_lanes, b_lanes)

    # (B, H, W*C) -> (B, N, C): identical memory layout, pure reshape
    # (matches torch's flatten(2).transpose(1, 2)).
    return out_hwc.reshape(B, N, C)


def _reference_dwconv(x_bnc, weight_oihw, bias, H, W):
    """Pure-JAX reference using lax.conv_general_dilated (grouped conv)."""
    B, N, C = x_bnc.shape
    x_nhwc = x_bnc.reshape(B, H, W, C)
    rhs = jnp.transpose(weight_oihw, (2, 3, 1, 0))  # (3, 3, 1, C) HWIO
    out = jax.lax.conv_general_dilated(
        x_nhwc, rhs, window_strides=(1, 1), padding="SAME",
        dimension_numbers=("NHWC", "HWIO", "NHWC"), feature_group_count=C)
    out = out + bias.reshape(1, 1, 1, C)
    return out.reshape(B, N, C)


if __name__ == "__main__":
    # Small shapes consistent with the module: dim (=C) = 8, H = W = 16, B = 2.
    # W*C = 128 -> the fused lane axis is exactly one full lane width.
    B, C, H, W = 2, 8, 16, 16
    N = H * W

    key = jax.random.PRNGKey(0)
    kx, kw, kb = jax.random.split(key, 3)

    x = jax.random.normal(kx, (B, N, C), dtype=jnp.float32)
    # nn.Conv2d(dim, dim, 3, groups=dim) -> weight (C, 1, 3, 3), bias (C,)
    weight = jax.random.normal(kw, (C, 1, 3, 3), dtype=jnp.float32) * 0.1
    bias = jax.random.normal(kb, (C,), dtype=jnp.float32) * 0.1

    out = dwconv_pallas(x, weight, bias, H, W)
    out = jax.block_until_ready(out)

    ref = _reference_dwconv(x, weight, bias, H, W)
    assert out.shape == (B, N, C)
    assert jnp.allclose(out, ref, atol=1e-5, rtol=1e-5), "mismatch vs reference"

    print("KERNEL_OK")
</pallas_src>

<mosaic_0001>
module attributes {stable_mosaic.version = 11 : i64} {
  func.func @_dwconv_kernel(%arg0: i32, %arg1: memref<1x16x128xf32, #tpu.memory_space<vmem>>, %arg2: memref<3x3x128xf32, #tpu.memory_space<vmem>>, %arg3: memref<1x128xf32, #tpu.memory_space<vmem>>, %arg4: memref<1x16x128xf32, #tpu.memory_space<vmem>>) attributes {dimension_semantics = [#tpu.dimension_semantics<parallel>], iteration_bounds = array<i64: 2>, scalar_prefetch = 0 : i64, scratch_operands = 0 : i64, tpu.core_type = #tpu.core_type<tc>, window_params = [{transform_indices = @transform_0, window_bounds = array<i64: 1, 16, 128>}, {pipeline_mode = #tpu.pipeline_mode<synchronous>, transform_indices = @transform_1, window_bounds = array<i64: 3, 3, 128>}, {pipeline_mode = #tpu.pipeline_mode<synchronous>, transform_indices = @transform_2, window_bounds = array<i64: 1, 128>}, {transform_indices = @transform_3, window_bounds = array<i64: 1, 16, 128>}]} {
    %c0 = arith.constant 0 : index
    %c0_0 = arith.constant 0 : index
    %c0_1 = arith.constant 0 : index
    %0 = vector.load %arg1[%c0, %c0_0, %c0_1] : memref<1x16x128xf32, #tpu.memory_space<vmem>>, vector<1x16x128xf32>
    %1 = vector.shape_cast %0 : vector<1x16x128xf32> to vector<16x128xf32>
    %c0_2 = arith.constant 0 : index
    %c0_3 = arith.constant 0 : index
    %c0_4 = arith.constant 0 : index
    %2 = vector.load %arg2[%c0_2, %c0_3, %c0_4] : memref<3x3x128xf32, #tpu.memory_space<vmem>>, vector<3x3x128xf32>
    %c0_5 = arith.constant 0 : index
    %c0_6 = arith.constant 0 : index
    %3 = vector.load %arg3[%c0_5, %c0_6] : memref<1x128xf32, #tpu.memory_space<vmem>>, vector<1x128xf32>
    %4 = vector.shape_cast %3 : vector<1x128xf32> to vector<128xf32>
    %cst = arith.constant 0.000000e+00 : f32
    %5 = vector.broadcast %cst : f32 to vector<1x128xf32>
    %6 = vector.extract_strided_slice %1 {offsets = [0, 0], sizes = [15, 128], strides = [1, 1]} : vector<16x128xf32> to vector<15x128xf32>
    %7 = tpu.concatenate %5, %6 in 0 : vector<1x128xf32>, vector<15x128xf32> -> vector<16x128xf32>
    %8 = vector.extract_strided_slice %1 {offsets = [1, 0], sizes = [15, 128], strides = [1, 1]} : vector<16x128xf32> to vector<15x128xf32>
    %9 = tpu.concatenate %8, %5 in 0 : vector<15x128xf32>, vector<1x128xf32> -> vector<16x128xf32>
    %10 = tpu.iota {dimensions = array<i32: 1>} : vector<16x128xi32>
    %c8_i32 = arith.constant 8 : i32
    %11 = vector.broadcast %c8_i32 : i32 to vector<16x128xi32>
    %12 = arith.cmpi sge, %10, %11 : vector<16x128xi32>
    %c120_i32 = arith.constant 120 : i32
    %13 = vector.broadcast %c120_i32 : i32 to vector<16x128xi32>
    %14 = arith.cmpi slt, %10, %13 : vector<16x128xi32>
    %15 = vector.shape_cast %4 : vector<128xf32> to vector<1x128xf32>
    %16 = vector.broadcast %15 : vector<1x128xf32> to vector<16x128xf32>
    %17 = vector.extract_strided_slice %2 {offsets = [0, 0, 0], sizes = [1, 1, 128], strides = [1, 1, 1]} : vector<3x3x128xf32> to vector<1x1x128xf32>
    %18 = vector.shape_cast %17 : vector<1x1x128xf32> to vector<128xf32>
    %19 = vector.shape_cast %18 : vector<128xf32> to vector<1x128xf32>
    %20 = vector.broadcast %19 : vector<1x128xf32> to vector<16x128xf32>
    %21 = arith.mulf %7, %20 : vector<16x128xf32>
    %22 = vector.extract_strided_slice %2 {offsets = [1, 0, 0], sizes = [1, 1, 128], strides = [1, 1, 1]} : vector<3x3x128xf32> to vector<1x1x128xf32>
    %23 = vector.shape_cast %22 : vector<1x1x128xf32> to vector<128xf32>
    %24 = vector.shape_cast %23 : vector<128xf32> to vector<1x128xf32>
    %25 = vector.broadcast %24 : vector<1x128xf32> to vector<16x128xf32>
    %26 = arith.mulf %1, %25 : vector<16x128xf32>
    %27 = arith.addf %21, %26 : vector<16x128xf32>
    %28 = vector.extract_strided_slice %2 {offsets = [2, 0, 0], sizes = [1, 1, 128], strides = [1, 1, 1]} : vector<3x3x128xf32> to vector<1x1x128xf32>
    %29 = vector.shape_cast %28 : vector<1x1x128xf32> to vector<128xf32>
    %30 = vector.shape_cast %29 : vector<128xf32> to vector<1x128xf32>
    %31 = vector.broadcast %30 : vector<1x128xf32> to vector<16x128xf32>
    %32 = arith.mulf %9, %31 : vector<16x128xf32>
    %33 = arith.addf %27, %32 : vector<16x128xf32>
    %c8_i32_7 = arith.constant 8 : i32
    %34 = tpu.dynamic_rotate %33 by %c8_i32_7 dim 1 : vector<16x128xf32>, i32 -> vector<16x128xf32>
    %cst_8 = arith.constant 0.000000e+00 : f32
    %35 = vector.broadcast %cst_8 : f32 to vector<16x128xf32>
    %36 = arith.select %12, %34, %35 : vector<16x128xi1>, vector<16x128xf32>
    %37 = arith.addf %16, %36 : vector<16x128xf32>
    %38 = vector.extract_strided_slice %2 {offsets = [0, 1, 0], sizes = [1, 1, 128], strides = [1, 1, 1]} : vector<3x3x128xf32> to vector<1x1x128xf32>
    %39 = vector.shape_cast %38 : vector<1x1x128xf32> to vector<128xf32>
    %40 = vector.shape_cast %39 : vector<128xf32> to vector<1x128xf32>
    %41 = vector.broadcast %40 : vector<1x128xf32> to vector<16x128xf32>
    %42 = arith.mulf %7, %41 : vector<16x128xf32>
    %43 = vector.extract_strided_slice %2 {offsets = [1, 1, 0], sizes = [1, 1, 128], strides = [1, 1, 1]} : vector<3x3x128xf32> to vector<1x1x128xf32>
    %44 = vector.shape_cast %43 : vector<1x1x128xf32> to vector<128xf32>
    %45 = vector.shape_cast %44 : vector<128xf32> to vector<1x128xf32>
    %46 = vector.broadcast %45 : vector<1x128xf32> to vector<16x128xf32>
    %47 = arith.mulf %1, %46 : vector<16x128xf32>
    %48 = arith.addf %42, %47 : vector<16x128xf32>
    %49 = vector.extract_strided_slice %2 {offsets = [2, 1, 0], sizes = [1, 1, 128], strides = [1, 1, 1]} : vector<3x3x128xf32> to vector<1x1x128xf32>
    %50 = vector.shape_cast %49 : vector<1x1x128xf32> to vector<128xf32>
    %51 = vector.shape_cast %50 : vector<128xf32> to vector<1x128xf32>
    %52 = vector.broadcast %51 : vector<1x128xf32> to vector<16x128xf32>
    %53 = arith.mulf %9, %52 : vector<16x128xf32>
    %54 = arith.addf %48, %53 : vector<16x128xf32>
    %55 = arith.addf %37, %54 : vector<16x128xf32>
    %56 = vector.extract_strided_slice %2 {offsets = [0, 2, 0], sizes = [1, 1, 128], strides = [1, 1, 1]} : vector<3x3x128xf32> to vector<1x1x128xf32>
    %57 = vector.shape_cast %56 : vector<1x1x128xf32> to vector<128xf32>
    %58 = vector.shape_cast %57 : vector<128xf32> to vector<1x128xf32>
    %59 = vector.broadcast %58 : vector<1x128xf32> to vector<16x128xf32>
    %60 = arith.mulf %7, %59 : vector<16x128xf32>
    %61 = vector.extract_strided_slice %2 {offsets = [1, 2, 0], sizes = [1, 1, 128], strides = [1, 1, 1]} : vector<3x3x128xf32> to vector<1x1x128xf32>
    %62 = vector.shape_cast %61 : vector<1x1x128xf32> to vector<128xf32>
    %63 = vector.shape_cast %62 : vector<128xf32> to vector<1x128xf32>
    %64 = vector.broadcast %63 : vector<1x128xf32> to vector<16x128xf32>
    %65 = arith.mulf %1, %64 : vector<16x128xf32>
    %66 = arith.addf %60, %65 : vector<16x128xf32>
    %67 = vector.extract_strided_slice %2 {offsets = [2, 2, 0], sizes = [1, 1, 128], strides = [1, 1, 1]} : vector<3x3x128xf32> to vector<1x1x128xf32>
    %68 = vector.shape_cast %67 : vector<1x1x128xf32> to vector<128xf32>
    %69 = vector.shape_cast %68 : vector<128xf32> to vector<1x128xf32>
    %70 = vector.broadcast %69 : vector<1x128xf32> to vector<16x128xf32>
    %71 = arith.mulf %9, %70 : vector<16x128xf32>
    %72 = arith.addf %66, %71 : vector<16x128xf32>
    %c120_i32_9 = arith.constant 120 : i32
    %73 = tpu.dynamic_rotate %72 by %c120_i32_9 dim 1 : vector<16x128xf32>, i32 -> vector<16x128xf32>
    %cst_10 = arith.constant 0.000000e+00 : f32
    %74 = vector.broadcast %cst_10 : f32 to vector<16x128xf32>
    %75 = arith.select %14, %73, %74 : vector<16x128xi1>, vector<16x128xf32>
    %76 = arith.addf %55, %75 : vector<16x128xf32>
    %c0_11 = arith.constant 0 : index
    %c0_12 = arith.constant 0 : index
    %c0_13 = arith.constant 0 : index
    %77 = vector.load %arg4[%c0_11, %c0_12, %c0_13] : memref<1x16x128xf32, #tpu.memory_space<vmem>>, vector<1x16x128xf32>
    %78 = vector.shape_cast %77 : vector<1x16x128xf32> to vector<16x128xf32>
    %79 = vector.shape_cast %76 : vector<16x128xf32> to vector<1x16x128xf32>
    tpu.vector_store %arg4[%c0_11, %c0_12, %c0_13], %79 {strides = array<i32>} : memref<1x16x128xf32, #tpu.memory_space<vmem>>, vector<1x16x128xf32>,
    return
  }
  func.func @transform_0(%arg0: i32) -> (i32, i32, i32) {
    %c0_i32 = arith.constant 0 : i32
    %c0_i32_0 = arith.constant 0 : i32
    %c0_i32_1 = arith.constant 0 : i32
    return %arg0, %c0_i32, %c0_i32_0 : i32, i32, i32
  }
  func.func @transform_1(%arg0: i32) -> (i32, i32, i32) {
    %c0_i32 = arith.constant 0 : i32
    %c0_i32_0 = arith.constant 0 : i32
    %c0_i32_1 = arith.constant 0 : i32
    %c0_i32_2 = arith.constant 0 : i32
    return %c0_i32, %c0_i32_0, %c0_i32_1 : i32, i32, i32
  }
  func.func @transform_2(%arg0: i32) -> (i32, i32) {
    %c0_i32 = arith.constant 0 : i32
    %c0_i32_0 = arith.constant 0 : i32
    %c0_i32_1 = arith.constant 0 : i32
    return %c0_i32, %c0_i32_0 : i32, i32
  }
  func.func @transform_3(%arg0: i32) -> (i32, i32, i32) {
    %c0_i32 = arith.constant 0 : i32
    %c0_i32_0 = arith.constant 0 : i32
    %c0_i32_1 = arith.constant 0 : i32
    return %arg0, %c0_i32, %c0_i32_0 : i32, i32, i32
  }
}

</mosaic_0001>

<llo_original>
// kernel: tpu_custom_call.1
$region0: #{tpu_custom_call.1}
  #allocation0 [shape = 'u32[]', space=smem, size = 0x4, offset = 0x4, fixed_abs, tag = 'smem constant byte address 0x4 - core index']
  #allocation1 [shape = 'u32[144,128]{1,0:T(1,128)}', space=vmem, size = 0x12000, scoped, tag = 'internal scratch']
  %s0 = inlined_call_operand.hbm [shape: f32[2,16,128], index: 0, kind: input, shape index: {}]
  %s1 = inlined_call_operand.hbm [shape: f32[3,3,128], index: 1, kind: input, shape index: {}]
  %s2 = inlined_call_operand.vmem [shape: f32[1,128], index: 2, kind: input, shape index: {}]
  %s3 = inlined_call_operand.hbm [shape: f32[2,16,128], index: 3, kind: output, shape index: {}]
  %s4 = sld [smem:[#allocation0]]
  $region53: #{tpu_custom_call.1} parent=0
    _
  %s6 = ssub.s32 1, %s4
  %s7 = scalar_select 0, %s6, %s4
  $region1: #{tpu_custom_call.1} parent=0
    #allocation2 [shape = 'u8[16384]{0}', space=vmem, size = 0x4000, scoped, tag = 'input window, operand 0']
    #allocation3 [shape = 's32[2]{0}', space=sflag, size = 0x8, scoped, tag = 'scoped memory for tpu_custom_call.1']
    #allocation4 [shape = 's32[2]{0}', space=sflag, size = 0x8, scoped, tag = 'scoped memory for tpu_custom_call.1']
    #allocation5 [shape = 'u8[6144]{0}', space=vmem, size = 0x1800, scoped, tag = 'input window, operand 1, single buffered']
    #allocation6 [shape = 's32[1]{0}', space=sflag, size = 0x4, scoped, tag = 'scoped memory for tpu_custom_call.1']
    #allocation7 [shape = 'u8[16384]{0}', space=vmem, size = 0x4000, scoped, tag = 'output window, operand 0']
    %8 = vsyncpa [#allocation3], 0
    %s9 = scalar_lea.sflag [#allocation3], 1
    %10 = vsyncpa %s9, 0
    %11 = vsyncpa [#allocation6], 0
    %12 = vsyncpa [#allocation4], 0
    %s13 = scalar_lea.sflag [#allocation4], 1
    %14 = vsyncpa %s13, 0
    loop: start=0, step=1, limit=4
    $region2: #{tpu_custom_call.1} parent=1 // loop_pre_header
      _
    $region3: #{tpu_custom_call.1} parent=1 // loop_header
      %s16 = sphi 0, %s20
      %p17 = scmp.ge.s32.totalorder %s16, 4
      %s26 = sphi 0, %s28
      %s29 = sphi 0, %s26
      %s30 = sphi 0, %s29
      %s46 = sphi 0, %s30
      %s50 = sphi 0, %s50
      %s52 = sphi 0, %s50
      %s53 = sphi 0, %s52
      %s67 = sphi 0, %s53
      %s71 = sphi 0, %s71
      %s73 = sphi 0, %s71
      %s74 = sphi 0, %s73
      %s88 = sphi 0, %s74
      %s94 = sphi 0, %s96
      %s97 = sphi 0, %s94
      %s98 = sphi 0, %s97
      %s114 = sphi 0, %s98
    $region4: #{tpu_custom_call.1} parent=1 // loop_header_branch
      %19 = sbr.rel (%p17) target = $region8
    $region5: #{tpu_custom_call.1} parent=1 // loop_body
      %s21 = ssub.s32 %s16, 1
      %s22 = ssub.s32 %s16, 2
      %s23 = sadd.s32 %s16, 1
      %s24 = ssub.s32 %s16, %s23
      %p25 = scmp.eq.s32.totalorder %s24, 0
      %s27 = sadd.s32 %s26, 1
      %s28 = scalar_select %p25, %s26, %s27
      %p31 = pneg %p25
      %p32 = scmp.eq.s32.totalorder %s16, 1
      %p33 = por %p31, %p32
      %p34 = scmp.ne.s32.totalorder %s26, %s29
      %p35 = scmp.eq.s32.totalorder %s16, 0
      %p36 = por %p34, %p35
      %p37 = scmp.ne.s32.totalorder %s26, %s29
      %p38 = scmp.eq.s32.totalorder %s21, 1
      %p39 = por %p37, %p38
      %p40 = scmp.ne.s32.totalorder %s29, %s30
      %p41 = scmp.eq.s32.totalorder %s21, 0
      %p42 = por %p40, %p41
      %p43 = scmp.ne.s32.totalorder %s29, %s30
      %p44 = scmp.eq.s32.totalorder %s22, 1
      %p45 = por %p43, %p44
      %p47 = scmp.ne.s32.totalorder %s30, %s46
      %p48 = scmp.eq.s32.totalorder %s22, 0
      %p49 = por %p47, %p48
      %s51 = sadd.s32 %s50, 1
      %p54 = scmp.eq.s32.totalorder %s16, 1
      %p55 = scmp.ne.s32.totalorder %s50, %s52
      %p56 = scmp.eq.s32.totalorder %s16, 0
      %p57 = por %p55, %p56
      %p58 = scmp.ne.s32.totalorder %s50, %s52
      %p59 = scmp.eq.s32.totalorder %s21, 1
      %p60 = por %p58, %p59
      %p61 = scmp.ne.s32.totalorder %s52, %s53
      %p62 = scmp.eq.s32.totalorder %s21, 0
      %p63 = por %p61, %p62
      %p64 = scmp.ne.s32.totalorder %s52, %s53
      %p65 = scmp.eq.s32.totalorder %s22, 1
      %p66 = por %p64, %p65
      %p68 = scmp.ne.s32.totalorder %s53, %s67
      %p69 = scmp.eq.s32.totalorder %s22, 0
      %p70 = por %p68, %p69
      %s72 = sadd.s32 %s71, 1
      %p75 = scmp.eq.s32.totalorder %s16, 1
      %p76 = scmp.ne.s32.totalorder %s71, %s73
      %p77 = scmp.eq.s32.totalorder %s16, 0
      %p78 = por %p76, %p77
      %p79 = scmp.ne.s32.totalorder %s71, %s73
      %p80 = scmp.eq.s32.totalorder %s21, 1
      %p81 = por %p79, %p80
      %p82 = scmp.ne.s32.totalorder %s73, %s74
      %p83 = scmp.eq.s32.totalorder %s21, 0
      %p84 = por %p82, %p83
      %p85 = scmp.ne.s32.totalorder %s73, %s74
      %p86 = scmp.eq.s32.totalorder %s22, 1
      %p87 = por %p85, %p86
      %p89 = scmp.ne.s32.totalorder %s74, %s88
      %p90 = scmp.eq.s32.totalorder %s22, 0
      %p91 = por %p89, %p90
      %s92 = ssub.s32 %s16, %s23
      %p93 = scmp.eq.s32.totalorder %s92, 0
      %s95 = sadd.s32 %s94, 1
      %s96 = scalar_select %p93, %s94, %s95
      %p99 = pneg %p93
      %p100 = scmp.eq.s32.totalorder %s16, 1
      %p101 = por %p99, %p100
      %p102 = scmp.ne.s32.totalorder %s94, %s97
      %p103 = scmp.eq.s32.totalorder %s16, 0
      %p104 = por %p102, %p103
      %p105 = scmp.ne.s32.totalorder %s94, %s97
      %p106 = scmp.eq.s32.totalorder %s21, 1
      %p107 = por %p105, %p106
      %p108 = scmp.ne.s32.totalorder %s97, %s98
      %p109 = scmp.eq.s32.totalorder %s21, 0
      %p110 = por %p108, %p109
      %p111 = scmp.ne.s32.totalorder %s97, %s98
      %p112 = scmp.eq.s32.totalorder %s22, 1
      %p113 = por %p111, %p112
      %p115 = scmp.ne.s32.totalorder %s98, %s114
      %p116 = scmp.eq.s32.totalorder %s22, 0
      %p117 = por %p115, %p116
      %p118 = scmp.le.s32.totalorder 1, %s16
      %p119 = scmp.lt.s32.totalorder %s16, 3
      %p120 = pnand %p118, %p119
      %p121 = pneg %p120
      // Predicated region
      $region9: #{tpu_custom_call.1} parent=5 // pred_check
        _
      $region10: #{tpu_custom_call.1} parent=5 // pred_check_branch
        %123 = sbr.rel (%p120) target = $region12
      $region11: #{tpu_custom_call.1} parent=5 // pred_region
        %s124 = ssub.s32 %s16, 1
        // Predicated region
        $region13: #{tpu_custom_call.1} parent=11 // pred_check
          %p125 = pneg %p63
        $region14: #{tpu_custom_call.1} parent=11 // pred_check_branch
          %127 = sbr.rel (%p125) target = $region16
        $region15: #{tpu_custom_call.1} parent=11 // pred_region
          %s129 = ssub.s32 192, 192
          %130 = vsyncadd [#allocation6], %s129
          %s131 = sshll.u32 [#allocation5], 4
          %s132 = int_to_ptr.vmem [resolvable:$true] %s131
          %137 = dma.hbm_to_vmem [thread:$0]  %s1, 192, %s132, [#allocation6], 64, 64, 4
        $region16: #{tpu_custom_call.1} parent=11 // pred_fallthru
          _
        // Predicated region
        $region17: #{tpu_custom_call.1} parent=11 // pred_check
          %p138 = pneg %p84
        $region18: #{tpu_custom_call.1} parent=11 // pred_check_branch
          %140 = sbr.rel (%p138) target = $region20
        $region19: #{tpu_custom_call.1} parent=11 // pred_region
          _
        $region20: #{tpu_custom_call.1} parent=11 // pred_fallthru
          _
      $region12: #{tpu_custom_call.1} parent=5 // pred_fallthru
        _
      %p141 = scmp.lt.s32.totalorder %s16, 2
      // Predicated region
      $region21: #{tpu_custom_call.1} parent=5 // pred_check
        %p142 = pneg %p141
      $region22: #{tpu_custom_call.1} parent=5 // pred_check_branch
        %144 = sbr.rel (%p142) target = $region24
      $region23: #{tpu_custom_call.1} parent=5 // pred_region
        // Predicated region
        $region25: #{tpu_custom_call.1} parent=23 // pred_check
          %p145 = pneg %p36
        $region26: #{tpu_custom_call.1} parent=23 // pred_check_branch
          %147 = sbr.rel (%p145) target = $region28
        $region27: #{tpu_custom_call.1} parent=23 // pred_region
          %s148 = sand.u32 %s26, 1
          %s149 = scalar_lea.sflag [#allocation3], %s148
          %s150 = sand.u32 %s26, 1
          %s151 = smul.addr %s150, 16
          %s152 = scalar_lea.vmem [#allocation2], %s151
          %s154 = ssub.s32 256, 256
          %155 = vsyncadd %s149, %s154
          %s156 = smul.addr %s16, 2
          %s157 = smul.addr %s156, 128
          %s158 = scalar_lea.hbm %s0, %s157
          %s159 = sshll.u32 %s152, 4
          %s160 = int_to_ptr.vmem [resolvable:$true] %s159
          %165 = dma.hbm_to_vmem [thread:$0]  %s158, 256, %s160, %s149, 128, 128, 8
        $region28: #{tpu_custom_call.1} parent=23 // pred_fallthru
          _
      $region24: #{tpu_custom_call.1} parent=5 // pred_fallthru
        _
      %p166 = scmp.le.s32.totalorder 1, %s16
      %p167 = scmp.lt.s32.totalorder %s16, 3
      %p168 = pnand %p166, %p167
      %p169 = pneg %p168
      // Predicated region
      $region29: #{tpu_custom_call.1} parent=5 // pred_check
        _
      $region30: #{tpu_custom_call.1} parent=5 // pred_check_branch
        %171 = sbr.rel (%p168) target = $region32
      $region31: #{tpu_custom_call.1} parent=5 // pred_region
        %s172 = ssub.s32 %s16, 1
        %s173 = sand.u32 %s29, 1
        %s174 = scalar_lea.sflag [#allocation3], %s173
        %s175 = sand.u32 %s29, 1
        %s176 = smul.addr %s175, 16
        %s177 = scalar_lea.vmem [#allocation2], %s176
        // Predicated region
        $region33: #{tpu_custom_call.1} parent=31 // pred_check
          %p178 = pneg %p42
        $region34: #{tpu_custom_call.1} parent=31 // pred_check_branch
          %180 = sbr.rel (%p178) target = $region36
        $region35: #{tpu_custom_call.1} parent=31 // pred_region
          %181 = dma.done %s174, 256
        $region36: #{tpu_custom_call.1} parent=31 // pred_fallthru
          _
        // Predicated region
        $region37: #{tpu_custom_call.1} parent=31 // pred_check
          %p182 = pneg %p63
        $region38: #{tpu_custom_call.1} parent=31 // pred_check_branch
          %184 = sbr.rel (%p182) target = $region40
        $region39: #{tpu_custom_call.1} parent=31 // pred_region
          %185 = dma.done [#allocation6], 192
        $region40: #{tpu_custom_call.1} parent=31 // pred_fallthru
          _
        %s186 = sand.u32 %s29, 1
        %s187 = scalar_lea.sflag [#allocation3], %s186
        %s188 = sand.u32 %s29, 1
        %s189 = smul.addr %s188, 16
        %s190 = scalar_lea.vmem [#allocation2], %s189
        %p191 = pneg %p42
        %p192 = pneg %p39
        %p193 = pneg %p63
        %p194 = pneg %p60
        %p195 = pneg %p84
        %p196 = pneg %p81
        %p197 = pneg %p110
        %p198 = pneg %p107
        %s199 = sand.u32 %s97, 1
        %s200 = scalar_lea.sflag [#allocation4], %s199
        %s201 = sand.u32 %s97, 1
        %s202 = smul.addr %s201, 16
        %s203 = scalar_lea.vmem [#allocation7], %s202
        %v204 = vld [vmem:[%s177] sm:$0xff]
        %v205 = vld [vmem:[%s177 + $0x8] sm:$0xff]
        %v206 = vld [vmem:[#allocation5] sm:$0x7]
        %v207 = vld [vmem:[#allocation5 + $0x4] sm:$0x7]
        %v208 = vld [vmem:[#allocation5 + $0x8] sm:$0x7]
        %v209 = vld [vmem:[%s2] sm:$0x1]
        %vm212 = vcmask 1040384
        %v213 = vrot.slane %v204, 7
        %v214 = vrot.slane %v205, 7
        %v215 = vsel %vm212, %v213, %v214
        %v218 = vsel %vm212, 0.0, %v213
        %vm219 = vcmask 1046528
        %v220 = vrot.slane %v204, 1
        %v221 = vrot.slane %v205, 1
        %v222 = vsel %vm219, %v220, %v221
        %v225 = vsel %vm219, %v221, 0.0
        %v226 = vlaneseq
        %v227 = vand.u32 %v226, 127
        %vm228 = vcmp.ge.s32.totalorder %v227, 8
        %vm229 = vcmp.lt.s32.totalorder %v227, 120
        %v231 = vlaneseq
        %v232 = vshrl.u32 %v231, 7
        %v233 = vsub.s32 0, %v232
        %v234 = vrot.slane %v209, %v233
        %v236 = vlaneseq
        %v237 = vshrl.u32 %v236, 7
        %v238 = vsub.s32 0, %v237
        %v239 = vrot.slane %v206, %v238
        %v240 = vmul.f32 %v218, %v239
        %v241 = vmul.f32 %v215, %v239
        %v242 = vlaneseq
        %v243 = vshrl.u32 %v242, 7
        %v244 = vsub.s32 0, %v243
        %v245 = vrot.slane %v207, %v244
        %v246 = vmul.f32 %v204, %v245
        %v247 = vmul.f32 %v205, %v245
        %v248 = vadd.f32 %v240, %v246
        %v249 = vadd.f32 %v241, %v247
        %v250 = vlaneseq
        %v251 = vshrl.u32 %v250, 7
        %v252 = vsub.s32 0, %v251
        %v253 = vrot.slane %v208, %v252
        %v254 = vmul.f32 %v222, %v253
        %v255 = vmul.f32 %v225, %v253
        %v256 = vadd.f32 %v248, %v254
        %v257 = vadd.f32 %v249, %v255
        %258 = vrot.lane.b32.xlu0 %v256, 8
        %v259 = vpop.permute.xlu0 %258
        %260 = vrot.lane.b32.xlu0 %v257, 8
        %v261 = vpop.permute.xlu0 %260
        %v262 = vsel %vm228, %v259, 0.0
        %v263 = vsel %vm228, %v261, 0.0
        %v264 = vadd.f32 %v234, %v262
        %v265 = vadd.f32 %v234, %v263
        %v266 = vlaneseq
        %v267 = vshrl.u32 %v266, 7
        %v268 = vsub.s32 1, %v267
        %v269 = vrot.slane %v206, %v268
        %v270 = vmul.f32 %v218, %v269
        %v271 = vmul.f32 %v215, %v269
        %v272 = vlaneseq
        %v273 = vshrl.u32 %v272, 7
        %v274 = vsub.s32 1, %v273
        %v275 = vrot.slane %v207, %v274
        %v276 = vmul.f32 %v204, %v275
        %v277 = vmul.f32 %v205, %v275
        %v278 = vadd.f32 %v270, %v276
        %v279 = vadd.f32 %v271, %v277
        %v280 = vlaneseq
        %v281 = vshrl.u32 %v280, 7
        %v282 = vsub.s32 1, %v281
        %v283 = vrot.slane %v208, %v282
        %v284 = vmul.f32 %v222, %v283
        %v285 = vmul.f32 %v225, %v283
        %v286 = vadd.f32 %v278, %v284
        %v287 = vadd.f32 %v279, %v285
        %v288 = vadd.f32 %v264, %v286
        %v289 = vadd.f32 %v265, %v287
        %v290 = vlaneseq
        %v291 = vshrl.u32 %v290, 7
        %v292 = vsub.s32 2, %v291
        %v293 = vrot.slane %v206, %v292
        %v294 = vmul.f32 %v218, %v293
        %v295 = vmul.f32 %v215, %v293
        %v296 = vlaneseq
        %v297 = vshrl.u32 %v296, 7
        %v298 = vsub.s32 2, %v297
        %v299 = vrot.slane %v207, %v298
        %v300 = vmul.f32 %v204, %v299
        %v301 = vmul.f32 %v205, %v299
        %v302 = vadd.f32 %v294, %v300
        %v303 = vadd.f32 %v295, %v301
        %v304 = vlaneseq
        %v305 = vshrl.u32 %v304, 7
        %v306 = vsub.s32 2, %v305
        %v307 = vrot.slane %v208, %v306
        %v308 = vmul.f32 %v222, %v307
        %v309 = vmul.f32 %v225, %v307
        %v310 = vadd.f32 %v302, %v308
        %v311 = vadd.f32 %v303, %v309
        %312 = vrot.lane.b32.xlu0 %v310, 120
        %v313 = vpop.permute.xlu0 %312
        %314 = vrot.lane.b32.xlu0 %v311, 120
        %v315 = vpop.permute.xlu0 %314
        %v316 = vsel %vm229, %v313, 0.0
        %v317 = vsel %vm229, %v315, 0.0
        %v318 = vadd.f32 %v288, %v316
        %v319 = vadd.f32 %v289, %v317
        %320 = vst [vmem:[%s203] sm:$0xff] %v318
        %321 = vst [vmem:[%s203 + $0x8] sm:$0xff] %v319
        %s322 = sand.u32 %s97, 1
        %s323 = scalar_lea.sflag [#allocation4], %s322
        %s324 = sand.u32 %s97, 1
        %s325 = smul.addr %s324, 16
        %s326 = scalar_lea.vmem [#allocation7], %s325
        // Predicated region
        $region41: #{tpu_custom_call.1} parent=31 // pred_check
          %p327 = pneg %p107
        $region42: #{tpu_custom_call.1} parent=31 // pred_check_branch
          %329 = sbr.rel (%p327) target = $region44
        $region43: #{tpu_custom_call.1} parent=31 // pred_region
          %s331 = ssub.s32 256, 256
          %332 = vsyncadd %s323, %s331
          %s333 = smul.addr %s21, 2
          %s334 = smul.addr %s333, 128
          %s335 = scalar_lea.hbm %s3, %s334
          %s336 = sshll.u32 %s326, 4
          %s337 = int_to_ptr.vmem [resolvable:$true] %s336
          %342 = dma.vmem_to_hbm [thread:$0]  %s337, 256, %s335, %s323, 128, 128, 8
        $region44: #{tpu_custom_call.1} parent=31 // pred_fallthru
          _
      $region32: #{tpu_custom_call.1} parent=5 // pred_fallthru
        _
      %p343 = scmp.le.s32.totalorder 2, %s16
      // Predicated region
      $region45: #{tpu_custom_call.1} parent=5 // pred_check
        %p344 = pneg %p343
      $region46: #{tpu_custom_call.1} parent=5 // pred_check_branch
        %346 = sbr.rel (%p344) target = $region48
      $region47: #{tpu_custom_call.1} parent=5 // pred_region
        %s347 = ssub.s32 %s16, 2
        // Predicated region
        $region49: #{tpu_custom_call.1} parent=47 // pred_check
          %p348 = pneg %p113
        $region50: #{tpu_custom_call.1} parent=47 // pred_check_branch
          %350 = sbr.rel (%p348) target = $region52
        $region51: #{tpu_custom_call.1} parent=47 // pred_region
          %s351 = sand.u32 %s98, 1
          %s352 = scalar_lea.sflag [#allocation4], %s351
          %s353 = sand.u32 %s98, 1
          %s354 = smul.addr %s353, 16
          %s355 = scalar_lea.vmem [#allocation7], %s354
          %356 = dma.done %s352, 256
        $region52: #{tpu_custom_call.1} parent=47 // pred_fallthru
          _
      $region48: #{tpu_custom_call.1} parent=5 // pred_fallthru
        _
    $region6: #{tpu_custom_call.1} parent=1 // loop_footer
      %s20 = sadd.s32 1, %s16
    $region7: #{tpu_custom_call.1} parent=1 // loop_footer_branch
      %15 = sbr.rel target = $region3
    $region8: #{tpu_custom_call.1} parent=1 // loop_exit
      _
    %357 = vsyncpa [#allocation3], 1
    %s358 = scalar_lea.sflag [#allocation3], 1
    %359 = vsyncpa %s358, 1
    %360 = vsyncpa [#allocation6], 1
    %361 = vsyncpa [#allocation4], 1
    %s362 = scalar_lea.sflag [#allocation4], 1
    %363 = vsyncpa %s362, 1

</llo_original>
